<compile_context>
chip_gen: v7x
topology: tpu7x:2x2x1
jax: 0.10.0
libtpu: 0.0.40
codegen_flags: <defaults>
</compile_context>

<pallas_src>
import jax
import jax.numpy as jnp
from jax.experimental import pallas as pl
from jax.experimental.pallas import tpu as pltpu

# ---- synthetic agent dimensions (consistent with EgoStatusMLPAgent) ----
B = 2              # batch (small example; kernel scales to large B via grid)
D_IN = 8           # ego status features: vel(2) + acc(2) + driving command(4)
HIDDEN = 128       # hidden width (exactly one MXU tile wide)
NUM_POSES = 8      # trajectory poses
D_OUT = NUM_POSES * 3   # 24

SUBLANE = 8
DEFAULT_TILE_B = 4096


def _round_up(n, m):
    return ((n + m - 1) // m) * m


def _mlp_agent_kernel(x_ref,
                      w1_ref, b1_ref,
                      w2_ref, b2_ref,
                      w3_ref, b3_ref,
                      w4_ref, b4_ref,
                      out_ref):
    """One batch tile of the agent MLP; weights stay resident across the grid."""
    # bf16 feeds to the MXU, f32 accumulation, f32 bias-add / ReLU on the VPU.
    x = x_ref[...].astype(jnp.bfloat16)

    h = jnp.dot(x, w1_ref[...], preferred_element_type=jnp.float32) + b1_ref[...]
    h = jnp.maximum(h, 0.0)

    h = jnp.dot(h.astype(jnp.bfloat16), w2_ref[...],
                preferred_element_type=jnp.float32) + b2_ref[...]
    h = jnp.maximum(h, 0.0)

    h = jnp.dot(h.astype(jnp.bfloat16), w3_ref[...],
                preferred_element_type=jnp.float32) + b3_ref[...]
    h = jnp.maximum(h, 0.0)

    y = jnp.dot(h.astype(jnp.bfloat16), w4_ref[...],
                preferred_element_type=jnp.float32) + b4_ref[...]
    out_ref[...] = y.astype(out_ref.dtype)


def agent_forward(x, params, tile_b=DEFAULT_TILE_B):
    """Pallas wrapper mirroring AgentPytorchModel.forward(x) -> trajectory."""
    batch = x.shape[0]
    # Pad only to a sublane multiple (NOT to a full tile) and use a cdiv grid
    # with a ragged edge tile; padded rows are discarded by the final slice.
    b_pad = _round_up(max(batch, 1), SUBLANE)

    # v7x: make sure large batches produce >= 2 grid tiles so both
    # TensorCores are fed under dimension_semantics=("parallel",).
    if b_pad >= 2 * SUBLANE:
        tile_b = min(tile_b, _round_up(pl.cdiv(b_pad, 2), SUBLANE))
    tile_b = max(SUBLANE, min(tile_b, b_pad))
    grid = (pl.cdiv(b_pad, tile_b),)

    (w1, b1), (w2, b2), (w3, b3), (w4, b4) = params
    w1b = w1.astype(jnp.bfloat16)   # (D_IN,  HIDDEN)
    w2b = w2.astype(jnp.bfloat16)   # (HIDDEN, HIDDEN)
    w3b = w3.astype(jnp.bfloat16)   # (HIDDEN, HIDDEN)
    w4b = w4.astype(jnp.bfloat16)   # (HIDDEN, D_OUT)

    # Sublane-align the batch only; the 8-wide feature axis is fed unpadded.
    if b_pad != batch:
        x_in = jnp.zeros((b_pad, D_IN), x.dtype).at[:batch].set(x)
    else:
        x_in = x

    # Batch-tiled x / out; weights and biases resident across the batch grid.
    x_spec = pl.BlockSpec((tile_b, D_IN), lambda i: (i, 0))
    out_spec = pl.BlockSpec((tile_b, D_OUT), lambda i: (i, 0))

    def _resident(shape):
        return pl.BlockSpec(shape, lambda i: (0, 0))

    in_specs = [
        x_spec,
        _resident((D_IN, HIDDEN)), _resident((1, HIDDEN)),
        _resident((HIDDEN, HIDDEN)), _resident((1, HIDDEN)),
        _resident((HIDDEN, HIDDEN)), _resident((1, HIDDEN)),
        _resident((HIDDEN, D_OUT)), _resident((1, D_OUT)),
    ]

    # Cost estimate for the real (narrow-I/O) footprint.
    flops = 2 * b_pad * (D_IN * HIDDEN
                         + HIDDEN * HIDDEN
                         + HIDDEN * HIDDEN
                         + HIDDEN * D_OUT)
    weight_bytes = 2 * (D_IN * HIDDEN + 2 * HIDDEN * HIDDEN
                        + HIDDEN * D_OUT)              # bf16 weights
    bias_bytes = 4 * (3 * HIDDEN + D_OUT)              # f32 biases
    io_bytes = 4 * b_pad * (D_IN + D_OUT)              # f32 x + out, unpadded
    cost = pl.CostEstimate(flops=flops, transcendentals=0,
                           bytes_accessed=weight_bytes + bias_bytes + io_bytes)

    flat = pl.pallas_call(
        _mlp_agent_kernel,
        out_shape=jax.ShapeDtypeStruct((b_pad, D_OUT), jnp.float32),
        grid=grid,
        in_specs=in_specs,
        out_specs=out_spec,
        compiler_params=pltpu.CompilerParams(
            dimension_semantics=("parallel",),
            vmem_limit_bytes=32 << 20),
        cost_estimate=cost,
    )(x_in, w1b, b1, w2b, b2, w3b, b3, w4b, b4)

    # glue: strip batch padding only; lanes are already exactly D_OUT wide.
    traj = flat if b_pad == batch else flat[:batch]
    return traj.reshape(batch, NUM_POSES, 3)


def init_params(key):
    """Deterministic synthetic parameter init (no checkpoint load)."""
    ks = jax.random.split(key, 8)
    dims = [(D_IN, HIDDEN), (HIDDEN, HIDDEN), (HIDDEN, HIDDEN), (HIDDEN, D_OUT)]
    params = []
    for i, (din, dout) in enumerate(dims):
        scale = 1.0 / jnp.sqrt(jnp.float32(din))
        w = jax.random.uniform(ks[2 * i], (din, dout), jnp.float32, -scale, scale)
        b = jax.random.uniform(ks[2 * i + 1], (1, dout), jnp.float32, -scale, scale)
        params.append((w, b))
    return params


def agent_forward_ref(x, params):
    """Plain-JAX reference mirroring the kernel's bf16-weight / f32-acc path."""
    def dot_bf16(a, w):
        return jnp.dot(a.astype(jnp.bfloat16), w.astype(jnp.bfloat16),
                       preferred_element_type=jnp.float32)

    (w1, b1), (w2, b2), (w3, b3), (w4, b4) = params
    h = jnp.maximum(dot_bf16(x, w1) + b1, 0.0)
    h = jnp.maximum(dot_bf16(h, w2) + b2, 0.0)
    h = jnp.maximum(dot_bf16(h, w3) + b3, 0.0)
    y = dot_bf16(h, w4) + b4
    return y.reshape(x.shape[0], NUM_POSES, 3)


if __name__ == "__main__":
    key = jax.random.PRNGKey(0)
    k_x, k_p = jax.random.split(key)

    x = jax.random.normal(k_x, (B, D_IN), dtype=jnp.float32)
    params = init_params(k_p)

    fwd = jax.jit(agent_forward)
    out = jax.block_until_ready(fwd(x, params))

    ref = agent_forward_ref(x, params)
    assert out.shape == (B, NUM_POSES, 3)
    assert jnp.allclose(out, ref, atol=2e-3, rtol=2e-3), (
        float(jnp.max(jnp.abs(out - ref))))

    print("KERNEL_OK")
</pallas_src>

<mosaic_0001>
module attributes {stable_mosaic.version = 11 : i64} {
  func.func @_mlp_agent_kernel(%arg0: i32, %arg1: memref<8x8xf32, #tpu.memory_space<vmem>>, %arg2: memref<8x128xbf16, #tpu.memory_space<vmem>>, %arg3: memref<1x128xf32, #tpu.memory_space<vmem>>, %arg4: memref<128x128xbf16, #tpu.memory_space<vmem>>, %arg5: memref<1x128xf32, #tpu.memory_space<vmem>>, %arg6: memref<128x128xbf16, #tpu.memory_space<vmem>>, %arg7: memref<1x128xf32, #tpu.memory_space<vmem>>, %arg8: memref<128x24xbf16, #tpu.memory_space<vmem>>, %arg9: memref<1x24xf32, #tpu.memory_space<vmem>>, %arg10: memref<8x24xf32, #tpu.memory_space<vmem>>) attributes {dimension_semantics = [#tpu.dimension_semantics<parallel>], iteration_bounds = array<i64: 1>, scalar_prefetch = 0 : i64, scratch_operands = 0 : i64, tpu.core_type = #tpu.core_type<tc>, window_params = [{transform_indices = @transform_0, window_bounds = array<i64: 8, 8>}, {pipeline_mode = #tpu.pipeline_mode<synchronous>, transform_indices = @transform_1, window_bounds = array<i64: 8, 128>}, {pipeline_mode = #tpu.pipeline_mode<synchronous>, transform_indices = @transform_2, window_bounds = array<i64: 1, 128>}, {pipeline_mode = #tpu.pipeline_mode<synchronous>, transform_indices = @transform_3, window_bounds = array<i64: 128, 128>}, {pipeline_mode = #tpu.pipeline_mode<synchronous>, transform_indices = @transform_4, window_bounds = array<i64: 1, 128>}, {pipeline_mode = #tpu.pipeline_mode<synchronous>, transform_indices = @transform_5, window_bounds = array<i64: 128, 128>}, {pipeline_mode = #tpu.pipeline_mode<synchronous>, transform_indices = @transform_6, window_bounds = array<i64: 1, 128>}, {pipeline_mode = #tpu.pipeline_mode<synchronous>, transform_indices = @transform_7, window_bounds = array<i64: 128, 24>}, {pipeline_mode = #tpu.pipeline_mode<synchronous>, transform_indices = @transform_8, window_bounds = array<i64: 1, 24>}, {transform_indices = @transform_9, window_bounds = array<i64: 8, 24>}]} {
    %c0 = arith.constant 0 : index
    %c0_0 = arith.constant 0 : index
    %0 = vector.load %arg1[%c0, %c0_0] : memref<8x8xf32, #tpu.memory_space<vmem>>, vector<8x8xf32>
    %1 = arith.truncf %0 : vector<8x8xf32> to vector<8x8xbf16>
    %c0_1 = arith.constant 0 : index
    %c0_2 = arith.constant 0 : index
    %2 = vector.load %arg2[%c0_1, %c0_2] : memref<8x128xbf16, #tpu.memory_space<vmem>>, vector<8x128xbf16>
    %cst = arith.constant dense<0.000000e+00> : vector<8x128xf32>
    %3 = tpu.matmul %1, %2, %cst {dimension_numbers = #tpu.dot_dimension_numbers<[1], [0], [0], [1], [0, 0, 1, 1], [], []>} : vector<8x8xbf16>, vector<8x128xbf16>, vector<8x128xf32> -> vector<8x128xf32>
    %c0_3 = arith.constant 0 : index
    %c0_4 = arith.constant 0 : index
    %4 = vector.load %arg3[%c0_3, %c0_4] : memref<1x128xf32, #tpu.memory_space<vmem>>, vector<1x128xf32>
    %5 = vector.broadcast %4 : vector<1x128xf32> to vector<8x128xf32>
    %6 = arith.addf %3, %5 : vector<8x128xf32>
    %cst_5 = arith.constant 0.000000e+00 : f32
    %7 = vector.broadcast %cst_5 : f32 to vector<8x128xf32>
    %8 = arith.maximumf %6, %7 : vector<8x128xf32>
    %9 = arith.truncf %8 : vector<8x128xf32> to vector<8x128xbf16>
    %c0_6 = arith.constant 0 : index
    %c0_7 = arith.constant 0 : index
    %10 = vector.load %arg4[%c0_6, %c0_7] : memref<128x128xbf16, #tpu.memory_space<vmem>>, vector<128x128xbf16>
    %cst_8 = arith.constant dense<0.000000e+00> : vector<8x128xf32>
    %11 = tpu.matmul %9, %10, %cst_8 {dimension_numbers = #tpu.dot_dimension_numbers<[1], [0], [0], [1], [0, 0, 1, 1], [], []>} : vector<8x128xbf16>, vector<128x128xbf16>, vector<8x128xf32> -> vector<8x128xf32>
    %c0_9 = arith.constant 0 : index
    %c0_10 = arith.constant 0 : index
    %12 = vector.load %arg5[%c0_9, %c0_10] : memref<1x128xf32, #tpu.memory_space<vmem>>, vector<1x128xf32>
    %13 = vector.broadcast %12 : vector<1x128xf32> to vector<8x128xf32>
    %14 = arith.addf %11, %13 : vector<8x128xf32>
    %cst_11 = arith.constant 0.000000e+00 : f32
    %15 = vector.broadcast %cst_11 : f32 to vector<8x128xf32>
    %16 = arith.maximumf %14, %15 : vector<8x128xf32>
    %17 = arith.truncf %16 : vector<8x128xf32> to vector<8x128xbf16>
    %c0_12 = arith.constant 0 : index
    %c0_13 = arith.constant 0 : index
    %18 = vector.load %arg6[%c0_12, %c0_13] : memref<128x128xbf16, #tpu.memory_space<vmem>>, vector<128x128xbf16>
    %cst_14 = arith.constant dense<0.000000e+00> : vector<8x128xf32>
    %19 = tpu.matmul %17, %18, %cst_14 {dimension_numbers = #tpu.dot_dimension_numbers<[1], [0], [0], [1], [0, 0, 1, 1], [], []>} : vector<8x128xbf16>, vector<128x128xbf16>, vector<8x128xf32> -> vector<8x128xf32>
    %c0_15 = arith.constant 0 : index
    %c0_16 = arith.constant 0 : index
    %20 = vector.load %arg7[%c0_15, %c0_16] : memref<1x128xf32, #tpu.memory_space<vmem>>, vector<1x128xf32>
    %21 = vector.broadcast %20 : vector<1x128xf32> to vector<8x128xf32>
    %22 = arith.addf %19, %21 : vector<8x128xf32>
    %cst_17 = arith.constant 0.000000e+00 : f32
    %23 = vector.broadcast %cst_17 : f32 to vector<8x128xf32>
    %24 = arith.maximumf %22, %23 : vector<8x128xf32>
    %25 = arith.truncf %24 : vector<8x128xf32> to vector<8x128xbf16>
    %c0_18 = arith.constant 0 : index
    %c0_19 = arith.constant 0 : index
    %26 = vector.load %arg8[%c0_18, %c0_19] : memref<128x24xbf16, #tpu.memory_space<vmem>>, vector<128x24xbf16>
    %cst_20 = arith.constant dense<0.000000e+00> : vector<8x24xf32>
    %27 = tpu.matmul %25, %26, %cst_20 {dimension_numbers = #tpu.dot_dimension_numbers<[1], [0], [0], [1], [0, 0, 1, 1], [], []>} : vector<8x128xbf16>, vector<128x24xbf16>, vector<8x24xf32> -> vector<8x24xf32>
    %c0_21 = arith.constant 0 : index
    %c0_22 = arith.constant 0 : index
    %28 = vector.load %arg9[%c0_21, %c0_22] : memref<1x24xf32, #tpu.memory_space<vmem>>, vector<1x24xf32>
    %29 = vector.broadcast %28 : vector<1x24xf32> to vector<8x24xf32>
    %30 = arith.addf %27, %29 : vector<8x24xf32>
    %c0_23 = arith.constant 0 : index
    %c0_24 = arith.constant 0 : index
    %31 = vector.load %arg10[%c0_23, %c0_24] : memref<8x24xf32, #tpu.memory_space<vmem>>, vector<8x24xf32>
    tpu.vector_store %arg10[%c0_23, %c0_24], %30 {strides = array<i32>} : memref<8x24xf32, #tpu.memory_space<vmem>>, vector<8x24xf32>,
    return
  }
  func.func @transform_0(%arg0: i32) -> (i32, i32) {
    %c0_i32 = arith.constant 0 : i32
    %c0_i32_0 = arith.constant 0 : i32
    return %arg0, %c0_i32 : i32, i32
  }
  func.func @transform_1(%arg0: i32) -> (i32, i32) {
    %c0_i32 = arith.constant 0 : i32
    %c0_i32_0 = arith.constant 0 : i32
    %c0_i32_1 = arith.constant 0 : i32
    return %c0_i32, %c0_i32_0 : i32, i32
  }
  func.func @transform_2(%arg0: i32) -> (i32, i32) {
    %c0_i32 = arith.constant 0 : i32
    %c0_i32_0 = arith.constant 0 : i32
    %c0_i32_1 = arith.constant 0 : i32
    return %c0_i32, %c0_i32_0 : i32, i32
  }
  func.func @transform_3(%arg0: i32) -> (i32, i32) {
    %c0_i32 = arith.constant 0 : i32
    %c0_i32_0 = arith.constant 0 : i32
    %c0_i32_1 = arith.constant 0 : i32
    return %c0_i32, %c0_i32_0 : i32, i32
  }
  func.func @transform_4(%arg0: i32) -> (i32, i32) {
    %c0_i32 = arith.constant 0 : i32
    %c0_i32_0 = arith.constant 0 : i32
    %c0_i32_1 = arith.constant 0 : i32
    return %c0_i32, %c0_i32_0 : i32, i32
  }
  func.func @transform_5(%arg0: i32) -> (i32, i32) {
    %c0_i32 = arith.constant 0 : i32
    %c0_i32_0 = arith.constant 0 : i32
    %c0_i32_1 = arith.constant 0 : i32
    return %c0_i32, %c0_i32_0 : i32, i32
  }
  func.func @transform_6(%arg0: i32) -> (i32, i32) {
    %c0_i32 = arith.constant 0 : i32
    %c0_i32_0 = arith.constant 0 : i32
    %c0_i32_1 = arith.constant 0 : i32
    return %c0_i32, %c0_i32_0 : i32, i32
  }
  func.func @transform_7(%arg0: i32) -> (i32, i32) {
    %c0_i32 = arith.constant 0 : i32
    %c0_i32_0 = arith.constant 0 : i32
    %c0_i32_1 = arith.constant 0 : i32
    return %c0_i32, %c0_i32_0 : i32, i32
  }
  func.func @transform_8(%arg0: i32) -> (i32, i32) {
    %c0_i32 = arith.constant 0 : i32
    %c0_i32_0 = arith.constant 0 : i32
    %c0_i32_1 = arith.constant 0 : i32
    return %c0_i32, %c0_i32_0 : i32, i32
  }
  func.func @transform_9(%arg0: i32) -> (i32, i32) {
    %c0_i32 = arith.constant 0 : i32
    %c0_i32_0 = arith.constant 0 : i32
    return %arg0, %c0_i32 : i32, i32
  }
}

</mosaic_0001>

<llo_original>
// kernel: agent_forward.1
$region0: #{agent_forward.1}
  #allocation0 [shape = 'u32[]', space=smem, size = 0x4, offset = 0x4, fixed_abs, tag = 'smem constant byte address 0x4 - core index']
  #allocation1 [shape = 'u32[144,128]{1,0:T(1,128)}', space=vmem, size = 0x12000, scoped, tag = 'internal scratch']
  %s0 = inlined_call_operand.vmem [shape: f32[8,8], index: 0, kind: input, shape index: {}]
  %s1 = inlined_call_operand.vmem [shape: bf16[8,128], index: 1, kind: input, shape index: {}]
  %s2 = inlined_call_operand.vmem [shape: f32[1,128], index: 2, kind: input, shape index: {}]
  %s3 = inlined_call_operand.vmem [shape: bf16[128,128], index: 3, kind: input, shape index: {}]
  %s4 = inlined_call_operand.vmem [shape: f32[1,128], index: 4, kind: input, shape index: {}]
  %s5 = inlined_call_operand.vmem [shape: bf16[128,128], index: 5, kind: input, shape index: {}]
  %s6 = inlined_call_operand.vmem [shape: f32[1,128], index: 6, kind: input, shape index: {}]
  %s7 = inlined_call_operand.vmem [shape: bf16[128,24], index: 7, kind: input, shape index: {}]
  %s8 = inlined_call_operand.vmem [shape: f32[1,24], index: 8, kind: input, shape index: {}]
  %s9 = inlined_call_operand.vmem [shape: f32[8,24], index: 9, kind: output, shape index: {}]
  %s10 = sld [smem:[#allocation0]]
  $region46: #{agent_forward.1} parent=0
    _
  %s12 = ssub.s32 1, %s10
  %s13 = scalar_select 0, %s12, %s10
  // Predicated region
  $region2: #{agent_forward.1} parent=0 // pred_check
    _
  $region3: #{agent_forward.1} parent=0 // pred_check_branch
    %15 = sbr.rel (0) target = $region5
  $region4: #{agent_forward.1} parent=0 // pred_region
    _
  $region5: #{agent_forward.1} parent=0 // pred_fallthru
    _
  // Predicated region
  $region6: #{agent_forward.1} parent=0 // pred_check
    _
  $region7: #{agent_forward.1} parent=0 // pred_check_branch
    %17 = sbr.rel (0) target = $region9
  $region8: #{agent_forward.1} parent=0 // pred_region
    _
  $region9: #{agent_forward.1} parent=0 // pred_fallthru
    _
  // Predicated region
  $region10: #{agent_forward.1} parent=0 // pred_check
    _
  $region11: #{agent_forward.1} parent=0 // pred_check_branch
    %19 = sbr.rel (0) target = $region13
  $region12: #{agent_forward.1} parent=0 // pred_region
    _
  $region13: #{agent_forward.1} parent=0 // pred_fallthru
    _
  // Predicated region
  $region14: #{agent_forward.1} parent=0 // pred_check
    _
  $region15: #{agent_forward.1} parent=0 // pred_check_branch
    %21 = sbr.rel (0) target = $region17
  $region16: #{agent_forward.1} parent=0 // pred_region
    _
  $region17: #{agent_forward.1} parent=0 // pred_fallthru
    _
  // Predicated region
  $region18: #{agent_forward.1} parent=0 // pred_check
    _
  $region19: #{agent_forward.1} parent=0 // pred_check_branch
    %23 = sbr.rel (0) target = $region21
  $region20: #{agent_forward.1} parent=0 // pred_region
    _
  $region21: #{agent_forward.1} parent=0 // pred_fallthru
    _
  // Predicated region
  $region22: #{agent_forward.1} parent=0 // pred_check
    _
  $region23: #{agent_forward.1} parent=0 // pred_check_branch
    %25 = sbr.rel (0) target = $region25
  $region24: #{agent_forward.1} parent=0 // pred_region
    _
  $region25: #{agent_forward.1} parent=0 // pred_fallthru
    _
  // Predicated region
  $region26: #{agent_forward.1} parent=0 // pred_check
    _
  $region27: #{agent_forward.1} parent=0 // pred_check_branch
    %27 = sbr.rel (0) target = $region29
  $region28: #{agent_forward.1} parent=0 // pred_region
    _
  $region29: #{agent_forward.1} parent=0 // pred_fallthru
    _
  // Predicated region
  $region30: #{agent_forward.1} parent=0 // pred_check
    _
  $region31: #{agent_forward.1} parent=0 // pred_check_branch
    %29 = sbr.rel (0) target = $region33
  $region32: #{agent_forward.1} parent=0 // pred_region
    _
  $region33: #{agent_forward.1} parent=0 // pred_fallthru
    _
  // Predicated region
  $region34: #{agent_forward.1} parent=0 // pred_check
    _
  $region35: #{agent_forward.1} parent=0 // pred_check_branch
    %31 = sbr.rel (0) target = $region37
  $region36: #{agent_forward.1} parent=0 // pred_region
    _
  $region37: #{agent_forward.1} parent=0 // pred_fallthru
    _
  %v33 = vld [vmem:[%s0] sm:$0xff]
  %v34 = vpack.c.bf16 %v33, %v33
  %v35 = vld [vmem:[%s1] sm:$0xf]
  %v36 = vld [vmem:[%s2] sm:$0x1]
  %v38 = vlaneseq
  %v39 = vshrl.u32 %v38, 7
  %v40 = vsub.s32 0, %v39
  %v41 = vrot.slane %v36, %v40
  %vm43 = vcmask 64512
  %v45 = vsel %vm43, %v34, 0
  %vm47 = vcmask 1043456
  %v49 = vsel %vm47, %v35, 0
  %51 = vmatprep.subr.bf16.mxu0 0
  %52 = vmatpush1.bf16.msra.mxu0 %v49
  %53 = vmatprep.subr.bf16.mxu0 0
  %54 = vmatpush1.bf16.msra.mxu0 0
  %55 = vmatprep.subr.bf16.mxu0 0
  %56 = vmatpush1.bf16.msra.mxu0 0
  %57 = vmatprep.subr.bf16.mxu0 0
  %58 = vmatpush1.bf16.msra.mxu0 0
  %59 = vmatprep.subr.bf16.mxu0 0
  %60 = vmatpush1.bf16.msra.mxu0 0
  %61 = vmatprep.subr.bf16.mxu0 0
  %62 = vmatpush1.bf16.msra.mxu0 0
  %63 = vmatprep.subr.bf16.mxu0 0
  %64 = vmatpush1.bf16.msra.mxu0 0
  %65 = vmatprep.subr.bf16.mxu0 0
  %66 = vmatpush1.bf16.msra.mxu0 0
  %67 = vmatprep.subr.bf16.mxu0 0
  %68 = vmatpush1.bf16.msra.mxu0 0
  %69 = vmatprep.subr.bf16.mxu0 0
  %70 = vmatpush1.bf16.msra.mxu0 0
  %71 = vmatprep.subr.bf16.mxu0 0
  %72 = vmatpush1.bf16.msra.mxu0 0
  %73 = vmatprep.subr.bf16.mxu0 0
  %74 = vmatpush1.bf16.msra.mxu0 0
  %75 = vmatprep.subr.bf16.mxu0 0
  %76 = vmatpush1.bf16.msra.mxu0 0
  %77 = vmatprep.subr.bf16.mxu0 0
  %78 = vmatpush1.bf16.msra.mxu0 0
  %79 = vmatprep.subr.bf16.mxu0 0
  %80 = vmatpush1.bf16.msra.mxu0 0
  %81 = vmatprep.subr.bf16.mxu0 0
  %82 = vmatpush1.bf16.msra.mxu0 0
  %83 = vmatprep.mubr.bf16.mxu0 0
  %84 = vmatmul.mubr.bf16.gmra.mrb[0].mxu0 %v45
  %v85 = vpop.f32.mrb[0].mxu0
  %v86 = vadd.f32 %v41, %v85
  %v87 = vpop.f32.mrb[0].mxu0
  %v88 = vpop.f32.mrb[0].mxu0
  %v89 = vpop.f32.mrb[0].mxu0
  %90 = vdwg.mxu0
  %v91 = vmax.f32 %v86, 0.0
  %v92 = vpack.c.bf16 %v91, %v91
  %v93 = vld [vmem:[%s3] sm:$0xf]
  %v94 = vld [vmem:[%s3 + $0x4] sm:$0xf]
  %v95 = vld [vmem:[%s3 + $0x8] sm:$0xf]
  %v96 = vld [vmem:[%s3 + $0xc] sm:$0xf]
  %v97 = vld [vmem:[%s3 + $0x10] sm:$0xf]
  %v98 = vld [vmem:[%s3 + $0x14] sm:$0xf]
  %v99 = vld [vmem:[%s3 + $0x18] sm:$0xf]
  %v100 = vld [vmem:[%s3 + $0x1c] sm:$0xf]
  %v101 = vld [vmem:[%s3 + $0x20] sm:$0xf]
  %v102 = vld [vmem:[%s3 + $0x24] sm:$0xf]
  %v103 = vld [vmem:[%s3 + $0x28] sm:$0xf]
  %v104 = vld [vmem:[%s3 + $0x2c] sm:$0xf]
  %v105 = vld [vmem:[%s3 + $0x30] sm:$0xf]
  %v106 = vld [vmem:[%s3 + $0x34] sm:$0xf]
  %v107 = vld [vmem:[%s3 + $0x38] sm:$0xf]
  %v108 = vld [vmem:[%s3 + $0x3c] sm:$0xf]
  %v109 = vld [vmem:[%s4] sm:$0x1]
  %v111 = vlaneseq
  %v112 = vshrl.u32 %v111, 7
  %v113 = vsub.s32 0, %v112
  %v114 = vrot.slane %v109, %v113
  %v132 = vunpack.c.l.b16 %v93
  %v133 = vunpack.c.l.b16 %v94
  %v134 = vunpack.c.l.b16 %v95
  %v135 = vunpack.c.l.b16 %v96
  %v136 = vunpack.c.l.b16 %v97
  %v137 = vunpack.c.l.b16 %v98
  %v138 = vunpack.c.l.b16 %v99
  %v139 = vunpack.c.l.b16 %v100
  %v140 = vunpack.c.l.b16 %v101
  %v141 = vunpack.c.l.b16 %v102
  %v142 = vunpack.c.l.b16 %v103
  %v143 = vunpack.c.l.b16 %v104
  %v144 = vunpack.c.l.b16 %v105
  %v145 = vunpack.c.l.b16 %v106
  %v146 = vunpack.c.l.b16 %v107
  %v147 = vunpack.c.l.b16 %v108
  %v148 = vpack.c.b16 %v133, %v132
  %v149 = vpack.c.b16 %v135, %v134
  %v150 = vpack.c.b16 %v137, %v136
  %v151 = vpack.c.b16 %v139, %v138
  %v152 = vpack.c.b16 %v141, %v140
  %v153 = vpack.c.b16 %v143, %v142
  %v154 = vpack.c.b16 %v145, %v144
  %v155 = vpack.c.b16 %v147, %v146
  %164 = vmatprep.subr.bf16.mxu0 0
  %165 = vmatpush1.bf16.msra.mxu0 %v148
  %166 = vmatprep.subr.bf16.mxu0 0
  %167 = vmatpush1.bf16.msra.mxu0 %v149
  %168 = vmatprep.subr.bf16.mxu0 0
  %169 = vmatpush1.bf16.msra.mxu0 %v150
  %170 = vmatprep.subr.bf16.mxu0 0
  %171 = vmatpush1.bf16.msra.mxu0 %v151
  %172 = vmatprep.subr.bf16.mxu0 0
  %173 = vmatpush1.bf16.msra.mxu0 %v152
  %174 = vmatprep.subr.bf16.mxu0 0
  %175 = vmatpush1.bf16.msra.mxu0 %v153
  %176 = vmatprep.subr.bf16.mxu0 0
  %177 = vmatpush1.bf16.msra.mxu0 %v154
  %178 = vmatprep.subr.bf16.mxu0 0
  %179 = vmatpush1.bf16.msra.mxu0 %v155
  %180 = vmatprep.subr.bf16.mxu0 0
  %181 = vmatpush1.bf16.msra.mxu0 0
  %182 = vmatprep.subr.bf16.mxu0 0
  %183 = vmatpush1.bf16.msra.mxu0 0
  %184 = vmatprep.subr.bf16.mxu0 0
  %185 = vmatpush1.bf16.msra.mxu0 0
  %186 = vmatprep.subr.bf16.mxu0 0
  %187 = vmatpush1.bf16.msra.mxu0 0
  %188 = vmatprep.subr.bf16.mxu0 0
  %189 = vmatpush1.bf16.msra.mxu0 0
  %190 = vmatprep.subr.bf16.mxu0 0
  %191 = vmatpush1.bf16.msra.mxu0 0
  %192 = vmatprep.subr.bf16.mxu0 0
  %193 = vmatpush1.bf16.msra.mxu0 0
  %194 = vmatprep.subr.bf16.mxu0 0
  %195 = vmatpush1.bf16.msra.mxu0 0
  %196 = vmatprep.mubr.bf16.mxu0 0
  %197 = vmatmul.mubr.bf16.gmra.mrb[0].mxu0 %v92
  %v198 = vpop.f32.mrb[0].mxu0
  %v199 = vadd.f32 %v114, %v198
  %v200 = vpop.f32.mrb[0].mxu0
  %v201 = vpop.f32.mrb[0].mxu0
  %v202 = vpop.f32.mrb[0].mxu0
  %203 = vdwg.mxu0
  %v204 = vmax.f32 %v199, 0.0
  %v205 = vpack.c.bf16 %v204, %v204
  %v206 = vld [vmem:[%s5] sm:$0xf]
  %v207 = vld [vmem:[%s5 + $0x4] sm:$0xf]
  %v208 = vld [vmem:[%s5 + $0x8] sm:$0xf]
  %v209 = vld [vmem:[%s5 + $0xc] sm:$0xf]
  %v210 = vld [vmem:[%s5 + $0x10] sm:$0xf]
  %v211 = vld [vmem:[%s5 + $0x14] sm:$0xf]
  %v212 = vld [vmem:[%s5 + $0x18] sm:$0xf]
  %v213 = vld [vmem:[%s5 + $0x1c] sm:$0xf]
  %v214 = vld [vmem:[%s5 + $0x20] sm:$0xf]
  %v215 = vld [vmem:[%s5 + $0x24] sm:$0xf]
  %v216 = vld [vmem:[%s5 + $0x28] sm:$0xf]
  %v217 = vld [vmem:[%s5 + $0x2c] sm:$0xf]
  %v218 = vld [vmem:[%s5 + $0x30] sm:$0xf]
  %v219 = vld [vmem:[%s5 + $0x34] sm:$0xf]
  %v220 = vld [vmem:[%s5 + $0x38] sm:$0xf]
  %v221 = vld [vmem:[%s5 + $0x3c] sm:$0xf]
  %v222 = vld [vmem:[%s6] sm:$0x1]
  %v224 = vlaneseq
  %v225 = vshrl.u32 %v224, 7
  %v226 = vsub.s32 0, %v225
  %v227 = vrot.slane %v222, %v226
  %v245 = vunpack.c.l.b16 %v206
  %v246 = vunpack.c.l.b16 %v207
  %v247 = vunpack.c.l.b16 %v208
  %v248 = vunpack.c.l.b16 %v209
  %v249 = vunpack.c.l.b16 %v210
  %v250 = vunpack.c.l.b16 %v211
  %v251 = vunpack.c.l.b16 %v212
  %v252 = vunpack.c.l.b16 %v213
  %v253 = vunpack.c.l.b16 %v214
  %v254 = vunpack.c.l.b16 %v215
  %v255 = vunpack.c.l.b16 %v216
  %v256 = vunpack.c.l.b16 %v217
  %v257 = vunpack.c.l.b16 %v218
  %v258 = vunpack.c.l.b16 %v219
  %v259 = vunpack.c.l.b16 %v220
  %v260 = vunpack.c.l.b16 %v221
  %v261 = vpack.c.b16 %v246, %v245
  %v262 = vpack.c.b16 %v248, %v247
  %v263 = vpack.c.b16 %v250, %v249
  %v264 = vpack.c.b16 %v252, %v251
  %v265 = vpack.c.b16 %v254, %v253
  %v266 = vpack.c.b16 %v256, %v255
  %v267 = vpack.c.b16 %v258, %v257
  %v268 = vpack.c.b16 %v260, %v259
  %277 = vmatprep.subr.bf16.mxu0 0
  %278 = vmatpush1.bf16.msra.mxu0 %v261
  %279 = vmatprep.subr.bf16.mxu0 0
  %280 = vmatpush1.bf16.msra.mxu0 %v262
  %281 = vmatprep.subr.bf16.mxu0 0
  %282 = vmatpush1.bf16.msra.mxu0 %v263
  %283 = vmatprep.subr.bf16.mxu0 0
  %284 = vmatpush1.bf16.msra.mxu0 %v264
  %285 = vmatprep.subr.bf16.mxu0 0
  %286 = vmatpush1.bf16.msra.mxu0 %v265
  %287 = vmatprep.subr.bf16.mxu0 0
  %288 = vmatpush1.bf16.msra.mxu0 %v266
  %289 = vmatprep.subr.bf16.mxu0 0
  %290 = vmatpush1.bf16.msra.mxu0 %v267
  %291 = vmatprep.subr.bf16.mxu0 0
  %292 = vmatpush1.bf16.msra.mxu0 %v268
  %293 = vmatprep.subr.bf16.mxu0 0
  %294 = vmatpush1.bf16.msra.mxu0 0
  %295 = vmatprep.subr.bf16.mxu0 0
  %296 = vmatpush1.bf16.msra.mxu0 0
  %297 = vmatprep.subr.bf16.mxu0 0
  %298 = vmatpush1.bf16.msra.mxu0 0
  %299 = vmatprep.subr.bf16.mxu0 0
  %300 = vmatpush1.bf16.msra.mxu0 0
  %301 = vmatprep.subr.bf16.mxu0 0
  %302 = vmatpush1.bf16.msra.mxu0 0
  %303 = vmatprep.subr.bf16.mxu0 0
  %304 = vmatpush1.bf16.msra.mxu0 0
  %305 = vmatprep.subr.bf16.mxu0 0
  %306 = vmatpush1.bf16.msra.mxu0 0
  %307 = vmatprep.subr.bf16.mxu0 0
  %308 = vmatpush1.bf16.msra.mxu0 0
  %309 = vmatprep.mubr.bf16.mxu0 0
  %310 = vmatmul.mubr.bf16.gmra.mrb[0].mxu0 %v205
  %v311 = vpop.f32.mrb[0].mxu0
  %v312 = vadd.f32 %v227, %v311
  %v313 = vpop.f32.mrb[0].mxu0
  %v314 = vpop.f32.mrb[0].mxu0
  %v315 = vpop.f32.mrb[0].mxu0
  %316 = vdwg.mxu0
  %v317 = vmax.f32 %v312, 0.0
  %v318 = vpack.c.bf16 %v317, %v317
  %v319 = vld [vmem:[%s7] sm:$0xf]
  %v320 = vld [vmem:[%s7 + $0x4] sm:$0xf]
  %v321 = vld [vmem:[%s7 + $0x8] sm:$0xf]
  %v322 = vld [vmem:[%s7 + $0xc] sm:$0xf]
  %v323 = vld [vmem:[%s7 + $0x10] sm:$0xf]
  %v324 = vld [vmem:[%s7 + $0x14] sm:$0xf]
  %v325 = vld [vmem:[%s7 + $0x18] sm:$0xf]
  %v326 = vld [vmem:[%s7 + $0x1c] sm:$0xf]
  %v327 = vld [vmem:[%s7 + $0x20] sm:$0xf]
  %v328 = vld [vmem:[%s7 + $0x24] sm:$0xf]
  %v329 = vld [vmem:[%s7 + $0x28] sm:$0xf]
  %v330 = vld [vmem:[%s7 + $0x2c] sm:$0xf]
  %v331 = vld [vmem:[%s7 + $0x30] sm:$0xf]
  %v332 = vld [vmem:[%s7 + $0x34] sm:$0xf]
  %v333 = vld [vmem:[%s7 + $0x38] sm:$0xf]
  %v334 = vld [vmem:[%s7 + $0x3c] sm:$0xf]
  %v335 = vld [vmem:[%s8] sm:$0x1]
  %v337 = vlaneseq
  %v338 = vshrl.u32 %v337, 7
  %v339 = vsub.s32 0, %v338
  %v340 = vrot.slane %v335, %v339
  %v358 = vunpack.c.l.b16 %v319
  %v359 = vunpack.c.l.b16 %v320
  %v360 = vunpack.c.l.b16 %v321
  %v361 = vunpack.c.l.b16 %v322
  %v362 = vunpack.c.l.b16 %v323
  %v363 = vunpack.c.l.b16 %v324
  %v364 = vunpack.c.l.b16 %v325
  %v365 = vunpack.c.l.b16 %v326
  %v366 = vunpack.c.l.b16 %v327
  %v367 = vunpack.c.l.b16 %v328
  %v368 = vunpack.c.l.b16 %v329
  %v369 = vunpack.c.l.b16 %v330
  %v370 = vunpack.c.l.b16 %v331
  %v371 = vunpack.c.l.b16 %v332
  %v372 = vunpack.c.l.b16 %v333
  %v373 = vunpack.c.l.b16 %v334
  %v374 = vpack.c.b16 %v359, %v358
  %v375 = vpack.c.b16 %v361, %v360
  %v376 = vpack.c.b16 %v363, %v362
  %v377 = vpack.c.b16 %v365, %v364
  %v378 = vpack.c.b16 %v367, %v366
  %v379 = vpack.c.b16 %v369, %v368
  %v380 = vpack.c.b16 %v371, %v370
  %v381 = vpack.c.b16 %v373, %v372
  %390 = vmatprep.subr.bf16.mxu0 0
  %391 = vmatpush1.bf16.msra.mxu0 %v374
  %392 = vmatprep.subr.bf16.mxu0 0
  %393 = vmatpush1.bf16.msra.mxu0 %v375
  %394 = vmatprep.subr.bf16.mxu0 0
  %395 = vmatpush1.bf16.msra.mxu0 %v376
  %396 = vmatprep.subr.bf16.mxu0 0
  %397 = vmatpush1.bf16.msra.mxu0 %v377
  %398 = vmatprep.subr.bf16.mxu0 0
  %399 = vmatpush1.bf16.msra.mxu0 %v378
  %400 = vmatprep.subr.bf16.mxu0 0
  %401 = vmatpush1.bf16.msra.mxu0 %v379
  %402 = vmatprep.subr.bf16.mxu0 0
  %403 = vmatpush1.bf16.msra.mxu0 %v380
  %404 = vmatprep.subr.bf16.mxu0 0
  %405 = vmatpush1.bf16.msra.mxu0 %v381
  %406 = vmatprep.subr.bf16.mxu0 0
  %407 = vmatpush1.bf16.msra.mxu0 0
  %408 = vmatprep.subr.bf16.mxu0 0
  %409 = vmatpush1.bf16.msra.mxu0 0
  %410 = vmatprep.subr.bf16.mxu0 0
  %411 = vmatpush1.bf16.msra.mxu0 0
  %412 = vmatprep.subr.bf16.mxu0 0
  %413 = vmatpush1.bf16.msra.mxu0 0
  %414 = vmatprep.subr.bf16.mxu0 0
  %415 = vmatpush1.bf16.msra.mxu0 0
  %416 = vmatprep.subr.bf16.mxu0 0
  %417 = vmatpush1.bf16.msra.mxu0 0
  %418 = vmatprep.subr.bf16.mxu0 0
  %419 = vmatpush1.bf16.msra.mxu0 0
  %420 = vmatprep.subr.bf16.mxu0 0
  %421 = vmatpush1.bf16.msra.mxu0 0
  %422 = vmatprep.mubr.bf16.mxu0 0
  %423 = vmatmul.mubr.bf16.gmra.mrb[0].mxu0 %v318
  %v424 = vpop.f32.mrb[0].mxu0
  %v425 = vadd.f32 %v340, %v424
  %v426 = vpop.f32.mrb[0].mxu0
  %v427 = vpop.f32.mrb[0].mxu0
  %v428 = vpop.f32.mrb[0].mxu0
  %429 = vdwg.mxu0
  %vm430 = vcmask 195584
  %431 = vst.msk [vmem:[%s9] sm:$0xff] %vm430, %v425
  // Predicated region
  $region38: #{agent_forward.1} parent=0 // pred_check
    _
  $region39: #{agent_forward.1} parent=0 // pred_check_branch
    %433 = sbr.rel (0) target = $region41
  $region40: #{agent_forward.1} parent=0 // pred_region
    _
  $region41: #{agent_forward.1} parent=0 // pred_fallthru
    _
  // Predicated region
  $region42: #{agent_forward.1} parent=0 // pred_check
    _
  $region43: #{agent_forward.1} parent=0 // pred_check_branch
    %435 = sbr.rel (0) target = $region45
  $region44: #{agent_forward.1} parent=0 // pred_region
    _
  $region45: #{agent_forward.1} parent=0 // pred_fallthru
    _

</llo_original>
